<compile_context>
chip_gen: v6e
topology: v6e:2x2x1
jax: 0.10.0
libtpu: 0.0.40
codegen_flags: <defaults>
</compile_context>

<pallas_src>
import functools

import jax
import jax.numpy as jnp
from jax.experimental import pallas as pl
from jax.experimental.pallas import tpu as pltpu


def _rpad8(n):
    return -(-n // 8) * 8


_NEG = -1.0e30  # "minus infinity" for padded output lanes (exp underflows to 0)


def _lstm_tagger_kernel(x_ref, p_ref, out_ref, *, E, H, L):
    """Whole forward pass (LSTM recurrence + Linear + log_softmax) in VMEM.

    x_ref:   (T, E)    input embeddings
    p_ref:   (R, W)    packed parameter slab (see prepare_params for layout)
    out_ref: (T, L)    log-softmax scores
    """
    T = x_ref.shape[0]
    G = 4 * H

    # Static, 8-row-aligned offsets into the packed slab.
    r_ih = 0
    r_hh = r_ih + _rpad8(E)
    r_bg = r_hh + _rpad8(H)
    r_wo = r_bg + 8
    r_bo = r_wo + _rpad8(H)

    w_ih = p_ref[r_ih:r_ih + E, :G]          # (E, 4H)
    w_hh = p_ref[r_hh:r_hh + H, :G]          # (H, 4H)
    b_g = p_ref[r_bg:r_bg + 1, :G]           # (1, 4H)  b_ih + b_hh
    w_out = p_ref[r_wo:r_wo + H, :]          # (H, W)   zero beyond column L
    b_out = p_ref[r_bo:r_bo + 1, :]          # (1, W)   -1e30 beyond column L

    # Hoisted: x @ W_ih has no serial dependence — one MXU pass for all steps.
    xg = jnp.dot(x_ref[...], w_ih, preferred_element_type=jnp.float32) + b_g  # (T,4H)

    h = jnp.zeros((1, H), jnp.float32)
    c = jnp.zeros((1, H), jnp.float32)
    hs = []

    # Fully unrolled recurrence (T static & tiny); state stays in vregs.
    for t in range(T):
        gates = xg[t:t + 1, :] + jnp.dot(h, w_hh,
                                         preferred_element_type=jnp.float32)  # (1,4H)
        # PyTorch gate order: [i, f, g, o].  One full-width sigmoid chain
        # instead of three 32-lane ones; tanh only on the g slice.
        sig = jax.nn.sigmoid(gates)                    # (1, 4H), 1 EUP chain
        g_g = jnp.tanh(gates[:, 2 * H:3 * H])          # (1, H)
        i_g = sig[:, 0 * H:1 * H]
        f_g = sig[:, 1 * H:2 * H]
        o_g = sig[:, 3 * H:4 * H]
        c = f_g * c + i_g * g_g
        h = o_g * jnp.tanh(c)
        hs.append(h)

    hs_all = jnp.concatenate(hs, axis=0)               # (T, H), vreg-resident

    # Epilogue (once, vectorized over T): Linear on padded 128-lane weights +
    # numerically stable log_softmax.  Padded lanes carry logit -1e30, so they
    # never win the max and add exactly 0 to the exp-sum.
    logits = jnp.dot(hs_all, w_out, preferred_element_type=jnp.float32) + b_out
    m = jnp.max(logits, axis=-1, keepdims=True)
    shifted = logits - m
    lse = jnp.log(jnp.sum(jnp.exp(shifted), axis=-1, keepdims=True))
    out_ref[...] = (shifted[:, :L] - lse).astype(out_ref.dtype)


def prepare_params(params):
    """One-time glue (call OUTSIDE the jitted forward): transpose to x@W
    convention, fold the two LSTM biases, and pack everything into a single
    lane-aligned (R, W) f32 slab so the kernel needs one parameter DMA.

    Slab layout (rows, all section starts 8-row aligned):
        [0            : pad8(E))        W_ih^T   (E, 4H)
        [pad8(E)      : +pad8(H))       W_hh^T   (H, 4H)
        next 8 rows, row 0 only         b_ih + b_hh        (1, 4H)
        next pad8(H) rows               W_out^T  (H, L) zero-padded to W lanes
        next 8 rows, row 0 only         b_out    (1, L) padded with -1e30
    """
    w_ih, w_hh = params["w_ih"], params["w_hh"]
    b_ih, b_hh = params["b_ih"], params["b_hh"]
    w_out, b_out = params["w_out"], params["b_out"]

    G, E = w_ih.shape
    H = w_hh.shape[1]
    L = w_out.shape[0]
    W = -(-max(G, 128) // 128) * 128          # slab lane width (multiple of 128)

    def pad_to(a, rows, cols, fill=0.0):
        blk = jnp.full((rows, cols), fill, jnp.float32)
        return blk.at[:a.shape[0], :a.shape[1]].set(a.astype(jnp.float32))

    w_ih_t = jnp.transpose(w_ih)                          # (E, 4H)
    w_hh_t = jnp.transpose(w_hh)                          # (H, 4H)
    b_gates = (b_ih + b_hh).reshape(1, G)                 # (1, 4H)
    w_out_t = jnp.transpose(w_out)                        # (H, L)
    b_out_r = b_out.reshape(1, L)                         # (1, L)

    slab = jnp.concatenate([
        pad_to(w_ih_t, _rpad8(E), W),
        pad_to(w_hh_t, _rpad8(H), W),
        pad_to(b_gates, 8, W),
        pad_to(w_out_t, _rpad8(H), W),                    # zeros beyond col L
        pad_to(b_out_r, 8, W, fill=_NEG),                 # -1e30 beyond col L
    ], axis=0)
    return slab


@functools.partial(jax.jit, static_argnames=("hidden_dim", "label_size"))
def lstm_tagger_forward(sentence, param_slab, *, hidden_dim, label_size):
    """sentence: (T, E) float32.  Returns (T, label_size) log-probs."""
    T, E = sentence.shape
    kernel = functools.partial(_lstm_tagger_kernel,
                               E=E, H=hidden_dim, L=label_size)
    vmem = pl.BlockSpec(memory_space=pltpu.MemorySpace.VMEM)
    return pl.pallas_call(
        kernel,
        out_shape=jax.ShapeDtypeStruct((T, label_size), jnp.float32),
        in_specs=[vmem, vmem],
        out_specs=vmem,
    )(sentence, param_slab)


def _reference_forward(sentence, params):
    """Pure-JAX reference mirroring PyTorch nn.LSTM + Linear + log_softmax."""
    w_ih, w_hh, b_ih, b_hh, w_out, b_out = (
        params["w_ih"], params["w_hh"], params["b_ih"], params["b_hh"],
        params["w_out"], params["b_out"])
    H = w_hh.shape[1]
    T = sentence.shape[0]
    h = jnp.zeros((H,), jnp.float32)
    c = jnp.zeros((H,), jnp.float32)
    outs = []
    for t in range(T):
        gates = w_ih @ sentence[t] + b_ih + w_hh @ h + b_hh
        i = jax.nn.sigmoid(gates[0 * H:1 * H])
        f = jax.nn.sigmoid(gates[1 * H:2 * H])
        g = jnp.tanh(gates[2 * H:3 * H])
        o = jax.nn.sigmoid(gates[3 * H:4 * H])
        c = f * c + i * g
        h = o * jnp.tanh(c)
        logits = w_out @ h + b_out
        outs.append(jax.nn.log_softmax(logits))
    return jnp.stack(outs, axis=0)


def init_params(key, embedding_dim, label_size, hidden_dim):
    """Deterministic init matching PyTorch default shapes (not a checkpoint)."""
    k = jax.random.split(key, 6)
    lstm_bound = 1.0 / jnp.sqrt(hidden_dim)
    lin_bound = 1.0 / jnp.sqrt(hidden_dim)
    u = lambda kk, shape, bnd: jax.random.uniform(
        kk, shape, jnp.float32, minval=-bnd, maxval=bnd)
    return {
        "w_ih": u(k[0], (4 * hidden_dim, embedding_dim), lstm_bound),
        "w_hh": u(k[1], (4 * hidden_dim, hidden_dim), lstm_bound),
        "b_ih": u(k[2], (4 * hidden_dim,), lstm_bound),
        "b_hh": u(k[3], (4 * hidden_dim,), lstm_bound),
        "w_out": u(k[4], (label_size, hidden_dim), lin_bound),
        "b_out": u(k[5], (label_size,), lin_bound),
    }


if __name__ == "__main__":
    embedding_dim = 32
    hidden_dim = 32
    label_size = 8
    seq_len = 8

    key = jax.random.PRNGKey(0)
    k_x, k_p = jax.random.split(key)
    sentence = jax.random.normal(k_x, (seq_len, embedding_dim), jnp.float32)
    params = init_params(k_p, embedding_dim, label_size, hidden_dim)

    # Packed/folded parameter slab computed once, outside the jitted forward.
    slab = jax.block_until_ready(prepare_params(params))

    out = lstm_tagger_forward(sentence, slab,
                              hidden_dim=hidden_dim, label_size=label_size)
    out = jax.block_until_ready(out)

    ref = _reference_forward(sentence, params)
    assert out.shape == (seq_len, label_size)
    assert jnp.allclose(out, ref, atol=1e-5, rtol=1e-5), "mismatch vs reference"
    print("KERNEL_OK")
</pallas_src>

<mosaic_0001>
module attributes {stable_mosaic.version = 11 : i64} {
  func.func @_lstm_tagger_kernel(%arg0: memref<8x32xf32, #tpu.memory_space<vmem>>, %arg1: memref<112x128xf32, #tpu.memory_space<vmem>>, %arg2: memref<8x8xf32, #tpu.memory_space<vmem>>) attributes {dimension_semantics = [], scalar_prefetch = 0 : i64, scratch_operands = 0 : i64, tpu.core_type = #tpu.core_type<tc>} {
    %c0 = arith.constant 0 : index
    %c0_0 = arith.constant 0 : index
    %0 = vector.load %arg1[%c0, %c0_0] : memref<112x128xf32, #tpu.memory_space<vmem>>, vector<32x128xf32>
    %c32 = arith.constant 32 : index
    %c0_1 = arith.constant 0 : index
    %1 = vector.load %arg1[%c32, %c0_1] : memref<112x128xf32, #tpu.memory_space<vmem>>, vector<32x128xf32>
    %c64 = arith.constant 64 : index
    %c0_2 = arith.constant 0 : index
    %2 = vector.load %arg1[%c64, %c0_2] : memref<112x128xf32, #tpu.memory_space<vmem>>, vector<1x128xf32>
    %c72 = arith.constant 72 : index
    %c0_3 = arith.constant 0 : index
    %3 = vector.load %arg1[%c72, %c0_3] : memref<112x128xf32, #tpu.memory_space<vmem>>, vector<32x128xf32>
    %c104 = arith.constant 104 : index
    %c0_4 = arith.constant 0 : index
    %4 = vector.load %arg1[%c104, %c0_4] : memref<112x128xf32, #tpu.memory_space<vmem>>, vector<1x128xf32>
    %c0_5 = arith.constant 0 : index
    %c0_6 = arith.constant 0 : index
    %5 = vector.load %arg0[%c0_5, %c0_6] : memref<8x32xf32, #tpu.memory_space<vmem>>, vector<8x32xf32>
    %cst = arith.constant dense<0.000000e+00> : vector<8x128xf32>
    %6 = tpu.matmul %5, %0, %cst {dimension_numbers = #tpu.dot_dimension_numbers<[1], [0], [0], [1], [0, 0, 1, 1], [], []>} : vector<8x32xf32>, vector<32x128xf32>, vector<8x128xf32> -> vector<8x128xf32>
    %7 = vector.broadcast %2 : vector<1x128xf32> to vector<8x128xf32>
    %8 = arith.addf %6, %7 : vector<8x128xf32>
    %cst_7 = arith.constant 0.000000e+00 : f32
    %9 = vector.broadcast %cst_7 : f32 to vector<1x32xf32>
    %cst_8 = arith.constant 0.000000e+00 : f32
    %10 = vector.broadcast %cst_8 : f32 to vector<1x32xf32>
    %11 = vector.extract_strided_slice %8 {offsets = [0, 0], sizes = [1, 128], strides = [1, 1]} : vector<8x128xf32> to vector<1x128xf32>
    %cst_9 = arith.constant dense<0.000000e+00> : vector<1x128xf32>
    %12 = tpu.matmul %9, %1, %cst_9 {dimension_numbers = #tpu.dot_dimension_numbers<[1], [0], [0], [1], [0, 0, 1, 1], [], []>} : vector<1x32xf32>, vector<32x128xf32>, vector<1x128xf32> -> vector<1x128xf32>
    %13 = arith.addf %11, %12 : vector<1x128xf32>
    %14 = arith.negf %13 : vector<1x128xf32>
    %15 = math.exp %14 : vector<1x128xf32>
    %cst_10 = arith.constant 1.000000e+00 : f32
    %16 = vector.broadcast %cst_10 : f32 to vector<1x128xf32>
    %17 = arith.addf %16, %15 : vector<1x128xf32>
    %18 = arith.divf %16, %17 : vector<1x128xf32>
    %19 = vector.extract_strided_slice %13 {offsets = [0, 64], sizes = [1, 32], strides = [1, 1]} : vector<1x128xf32> to vector<1x32xf32>
    %20 = math.tanh %19 : vector<1x32xf32>
    %21 = vector.extract_strided_slice %18 {offsets = [0, 0], sizes = [1, 32], strides = [1, 1]} : vector<1x128xf32> to vector<1x32xf32>
    %22 = vector.extract_strided_slice %18 {offsets = [0, 32], sizes = [1, 32], strides = [1, 1]} : vector<1x128xf32> to vector<1x32xf32>
    %23 = vector.extract_strided_slice %18 {offsets = [0, 96], sizes = [1, 32], strides = [1, 1]} : vector<1x128xf32> to vector<1x32xf32>
    %24 = arith.mulf %22, %10 : vector<1x32xf32>
    %25 = arith.mulf %21, %20 : vector<1x32xf32>
    %26 = arith.addf %24, %25 : vector<1x32xf32>
    %27 = math.tanh %26 : vector<1x32xf32>
    %28 = arith.mulf %23, %27 : vector<1x32xf32>
    %29 = vector.extract_strided_slice %8 {offsets = [1, 0], sizes = [1, 128], strides = [1, 1]} : vector<8x128xf32> to vector<1x128xf32>
    %cst_11 = arith.constant dense<0.000000e+00> : vector<1x128xf32>
    %30 = tpu.matmul %28, %1, %cst_11 {dimension_numbers = #tpu.dot_dimension_numbers<[1], [0], [0], [1], [0, 0, 1, 1], [], []>} : vector<1x32xf32>, vector<32x128xf32>, vector<1x128xf32> -> vector<1x128xf32>
    %31 = arith.addf %29, %30 : vector<1x128xf32>
    %32 = arith.negf %31 : vector<1x128xf32>
    %33 = math.exp %32 : vector<1x128xf32>
    %cst_12 = arith.constant 1.000000e+00 : f32
    %34 = vector.broadcast %cst_12 : f32 to vector<1x128xf32>
    %35 = arith.addf %34, %33 : vector<1x128xf32>
    %36 = arith.divf %34, %35 : vector<1x128xf32>
    %37 = vector.extract_strided_slice %31 {offsets = [0, 64], sizes = [1, 32], strides = [1, 1]} : vector<1x128xf32> to vector<1x32xf32>
    %38 = math.tanh %37 : vector<1x32xf32>
    %39 = vector.extract_strided_slice %36 {offsets = [0, 0], sizes = [1, 32], strides = [1, 1]} : vector<1x128xf32> to vector<1x32xf32>
    %40 = vector.extract_strided_slice %36 {offsets = [0, 32], sizes = [1, 32], strides = [1, 1]} : vector<1x128xf32> to vector<1x32xf32>
    %41 = vector.extract_strided_slice %36 {offsets = [0, 96], sizes = [1, 32], strides = [1, 1]} : vector<1x128xf32> to vector<1x32xf32>
    %42 = arith.mulf %40, %26 : vector<1x32xf32>
    %43 = arith.mulf %39, %38 : vector<1x32xf32>
    %44 = arith.addf %42, %43 : vector<1x32xf32>
    %45 = math.tanh %44 : vector<1x32xf32>
    %46 = arith.mulf %41, %45 : vector<1x32xf32>
    %47 = vector.extract_strided_slice %8 {offsets = [2, 0], sizes = [1, 128], strides = [1, 1]} : vector<8x128xf32> to vector<1x128xf32>
    %cst_13 = arith.constant dense<0.000000e+00> : vector<1x128xf32>
    %48 = tpu.matmul %46, %1, %cst_13 {dimension_numbers = #tpu.dot_dimension_numbers<[1], [0], [0], [1], [0, 0, 1, 1], [], []>} : vector<1x32xf32>, vector<32x128xf32>, vector<1x128xf32> -> vector<1x128xf32>
    %49 = arith.addf %47, %48 : vector<1x128xf32>
    %50 = arith.negf %49 : vector<1x128xf32>
    %51 = math.exp %50 : vector<1x128xf32>
    %cst_14 = arith.constant 1.000000e+00 : f32
    %52 = vector.broadcast %cst_14 : f32 to vector<1x128xf32>
    %53 = arith.addf %52, %51 : vector<1x128xf32>
    %54 = arith.divf %52, %53 : vector<1x128xf32>
    %55 = vector.extract_strided_slice %49 {offsets = [0, 64], sizes = [1, 32], strides = [1, 1]} : vector<1x128xf32> to vector<1x32xf32>
    %56 = math.tanh %55 : vector<1x32xf32>
    %57 = vector.extract_strided_slice %54 {offsets = [0, 0], sizes = [1, 32], strides = [1, 1]} : vector<1x128xf32> to vector<1x32xf32>
    %58 = vector.extract_strided_slice %54 {offsets = [0, 32], sizes = [1, 32], strides = [1, 1]} : vector<1x128xf32> to vector<1x32xf32>
    %59 = vector.extract_strided_slice %54 {offsets = [0, 96], sizes = [1, 32], strides = [1, 1]} : vector<1x128xf32> to vector<1x32xf32>
    %60 = arith.mulf %58, %44 : vector<1x32xf32>
    %61 = arith.mulf %57, %56 : vector<1x32xf32>
    %62 = arith.addf %60, %61 : vector<1x32xf32>
    %63 = math.tanh %62 : vector<1x32xf32>
    %64 = arith.mulf %59, %63 : vector<1x32xf32>
    %65 = vector.extract_strided_slice %8 {offsets = [3, 0], sizes = [1, 128], strides = [1, 1]} : vector<8x128xf32> to vector<1x128xf32>
    %cst_15 = arith.constant dense<0.000000e+00> : vector<1x128xf32>
    %66 = tpu.matmul %64, %1, %cst_15 {dimension_numbers = #tpu.dot_dimension_numbers<[1], [0], [0], [1], [0, 0, 1, 1], [], []>} : vector<1x32xf32>, vector<32x128xf32>, vector<1x128xf32> -> vector<1x128xf32>
    %67 = arith.addf %65, %66 : vector<1x128xf32>
    %68 = arith.negf %67 : vector<1x128xf32>
    %69 = math.exp %68 : vector<1x128xf32>
    %cst_16 = arith.constant 1.000000e+00 : f32
    %70 = vector.broadcast %cst_16 : f32 to vector<1x128xf32>
    %71 = arith.addf %70, %69 : vector<1x128xf32>
    %72 = arith.divf %70, %71 : vector<1x128xf32>
    %73 = vector.extract_strided_slice %67 {offsets = [0, 64], sizes = [1, 32], strides = [1, 1]} : vector<1x128xf32> to vector<1x32xf32>
    %74 = math.tanh %73 : vector<1x32xf32>
    %75 = vector.extract_strided_slice %72 {offsets = [0, 0], sizes = [1, 32], strides = [1, 1]} : vector<1x128xf32> to vector<1x32xf32>
    %76 = vector.extract_strided_slice %72 {offsets = [0, 32], sizes = [1, 32], strides = [1, 1]} : vector<1x128xf32> to vector<1x32xf32>
    %77 = vector.extract_strided_slice %72 {offsets = [0, 96], sizes = [1, 32], strides = [1, 1]} : vector<1x128xf32> to vector<1x32xf32>
    %78 = arith.mulf %76, %62 : vector<1x32xf32>
    %79 = arith.mulf %75, %74 : vector<1x32xf32>
    %80 = arith.addf %78, %79 : vector<1x32xf32>
    %81 = math.tanh %80 : vector<1x32xf32>
    %82 = arith.mulf %77, %81 : vector<1x32xf32>
    %83 = vector.extract_strided_slice %8 {offsets = [4, 0], sizes = [1, 128], strides = [1, 1]} : vector<8x128xf32> to vector<1x128xf32>
    %cst_17 = arith.constant dense<0.000000e+00> : vector<1x128xf32>
    %84 = tpu.matmul %82, %1, %cst_17 {dimension_numbers = #tpu.dot_dimension_numbers<[1], [0], [0], [1], [0, 0, 1, 1], [], []>} : vector<1x32xf32>, vector<32x128xf32>, vector<1x128xf32> -> vector<1x128xf32>
    %85 = arith.addf %83, %84 : vector<1x128xf32>
    %86 = arith.negf %85 : vector<1x128xf32>
    %87 = math.exp %86 : vector<1x128xf32>
    %cst_18 = arith.constant 1.000000e+00 : f32
    %88 = vector.broadcast %cst_18 : f32 to vector<1x128xf32>
    %89 = arith.addf %88, %87 : vector<1x128xf32>
    %90 = arith.divf %88, %89 : vector<1x128xf32>
    %91 = vector.extract_strided_slice %85 {offsets = [0, 64], sizes = [1, 32], strides = [1, 1]} : vector<1x128xf32> to vector<1x32xf32>
    %92 = math.tanh %91 : vector<1x32xf32>
    %93 = vector.extract_strided_slice %90 {offsets = [0, 0], sizes = [1, 32], strides = [1, 1]} : vector<1x128xf32> to vector<1x32xf32>
    %94 = vector.extract_strided_slice %90 {offsets = [0, 32], sizes = [1, 32], strides = [1, 1]} : vector<1x128xf32> to vector<1x32xf32>
    %95 = vector.extract_strided_slice %90 {offsets = [0, 96], sizes = [1, 32], strides = [1, 1]} : vector<1x128xf32> to vector<1x32xf32>
    %96 = arith.mulf %94, %80 : vector<1x32xf32>
    %97 = arith.mulf %93, %92 : vector<1x32xf32>
    %98 = arith.addf %96, %97 : vector<1x32xf32>
    %99 = math.tanh %98 : vector<1x32xf32>
    %100 = arith.mulf %95, %99 : vector<1x32xf32>
    %101 = vector.extract_strided_slice %8 {offsets = [5, 0], sizes = [1, 128], strides = [1, 1]} : vector<8x128xf32> to vector<1x128xf32>
    %cst_19 = arith.constant dense<0.000000e+00> : vector<1x128xf32>
    %102 = tpu.matmul %100, %1, %cst_19 {dimension_numbers = #tpu.dot_dimension_numbers<[1], [0], [0], [1], [0, 0, 1, 1], [], []>} : vector<1x32xf32>, vector<32x128xf32>, vector<1x128xf32> -> vector<1x128xf32>
    %103 = arith.addf %101, %102 : vector<1x128xf32>
    %104 = arith.negf %103 : vector<1x128xf32>
    %105 = math.exp %104 : vector<1x128xf32>
    %cst_20 = arith.constant 1.000000e+00 : f32
    %106 = vector.broadcast %cst_20 : f32 to vector<1x128xf32>
    %107 = arith.addf %106, %105 : vector<1x128xf32>
    %108 = arith.divf %106, %107 : vector<1x128xf32>
    %109 = vector.extract_strided_slice %103 {offsets = [0, 64], sizes = [1, 32], strides = [1, 1]} : vector<1x128xf32> to vector<1x32xf32>
    %110 = math.tanh %109 : vector<1x32xf32>
    %111 = vector.extract_strided_slice %108 {offsets = [0, 0], sizes = [1, 32], strides = [1, 1]} : vector<1x128xf32> to vector<1x32xf32>
    %112 = vector.extract_strided_slice %108 {offsets = [0, 32], sizes = [1, 32], strides = [1, 1]} : vector<1x128xf32> to vector<1x32xf32>
    %113 = vector.extract_strided_slice %108 {offsets = [0, 96], sizes = [1, 32], strides = [1, 1]} : vector<1x128xf32> to vector<1x32xf32>
    %114 = arith.mulf %112, %98 : vector<1x32xf32>
    %115 = arith.mulf %111, %110 : vector<1x32xf32>
    %116 = arith.addf %114, %115 : vector<1x32xf32>
    %117 = math.tanh %116 : vector<1x32xf32>
    %118 = arith.mulf %113, %117 : vector<1x32xf32>
    %119 = vector.extract_strided_slice %8 {offsets = [6, 0], sizes = [1, 128], strides = [1, 1]} : vector<8x128xf32> to vector<1x128xf32>
    %cst_21 = arith.constant dense<0.000000e+00> : vector<1x128xf32>
    %120 = tpu.matmul %118, %1, %cst_21 {dimension_numbers = #tpu.dot_dimension_numbers<[1], [0], [0], [1], [0, 0, 1, 1], [], []>} : vector<1x32xf32>, vector<32x128xf32>, vector<1x128xf32> -> vector<1x128xf32>
    %121 = arith.addf %119, %120 : vector<1x128xf32>
    %122 = arith.negf %121 : vector<1x128xf32>
    %123 = math.exp %122 : vector<1x128xf32>
    %cst_22 = arith.constant 1.000000e+00 : f32
    %124 = vector.broadcast %cst_22 : f32 to vector<1x128xf32>
    %125 = arith.addf %124, %123 : vector<1x128xf32>
    %126 = arith.divf %124, %125 : vector<1x128xf32>
    %127 = vector.extract_strided_slice %121 {offsets = [0, 64], sizes = [1, 32], strides = [1, 1]} : vector<1x128xf32> to vector<1x32xf32>
    %128 = math.tanh %127 : vector<1x32xf32>
    %129 = vector.extract_strided_slice %126 {offsets = [0, 0], sizes = [1, 32], strides = [1, 1]} : vector<1x128xf32> to vector<1x32xf32>
    %130 = vector.extract_strided_slice %126 {offsets = [0, 32], sizes = [1, 32], strides = [1, 1]} : vector<1x128xf32> to vector<1x32xf32>
    %131 = vector.extract_strided_slice %126 {offsets = [0, 96], sizes = [1, 32], strides = [1, 1]} : vector<1x128xf32> to vector<1x32xf32>
    %132 = arith.mulf %130, %116 : vector<1x32xf32>
    %133 = arith.mulf %129, %128 : vector<1x32xf32>
    %134 = arith.addf %132, %133 : vector<1x32xf32>
    %135 = math.tanh %134 : vector<1x32xf32>
    %136 = arith.mulf %131, %135 : vector<1x32xf32>
    %137 = vector.extract_strided_slice %8 {offsets = [7, 0], sizes = [1, 128], strides = [1, 1]} : vector<8x128xf32> to vector<1x128xf32>
    %cst_23 = arith.constant dense<0.000000e+00> : vector<1x128xf32>
    %138 = tpu.matmul %136, %1, %cst_23 {dimension_numbers = #tpu.dot_dimension_numbers<[1], [0], [0], [1], [0, 0, 1, 1], [], []>} : vector<1x32xf32>, vector<32x128xf32>, vector<1x128xf32> -> vector<1x128xf32>
    %139 = arith.addf %137, %138 : vector<1x128xf32>
    %140 = arith.negf %139 : vector<1x128xf32>
    %141 = math.exp %140 : vector<1x128xf32>
    %cst_24 = arith.constant 1.000000e+00 : f32
    %142 = vector.broadcast %cst_24 : f32 to vector<1x128xf32>
    %143 = arith.addf %142, %141 : vector<1x128xf32>
    %144 = arith.divf %142, %143 : vector<1x128xf32>
    %145 = vector.extract_strided_slice %139 {offsets = [0, 64], sizes = [1, 32], strides = [1, 1]} : vector<1x128xf32> to vector<1x32xf32>
    %146 = math.tanh %145 : vector<1x32xf32>
    %147 = vector.extract_strided_slice %144 {offsets = [0, 0], sizes = [1, 32], strides = [1, 1]} : vector<1x128xf32> to vector<1x32xf32>
    %148 = vector.extract_strided_slice %144 {offsets = [0, 32], sizes = [1, 32], strides = [1, 1]} : vector<1x128xf32> to vector<1x32xf32>
    %149 = vector.extract_strided_slice %144 {offsets = [0, 96], sizes = [1, 32], strides = [1, 1]} : vector<1x128xf32> to vector<1x32xf32>
    %150 = arith.mulf %148, %134 : vector<1x32xf32>
    %151 = arith.mulf %147, %146 : vector<1x32xf32>
    %152 = arith.addf %150, %151 : vector<1x32xf32>
    %153 = math.tanh %152 : vector<1x32xf32>
    %154 = arith.mulf %149, %153 : vector<1x32xf32>
    %155 = tpu.concatenate %28, %46, %64, %82, %100, %118, %136, %154 in 0 : vector<1x32xf32>, vector<1x32xf32>, vector<1x32xf32>, vector<1x32xf32>, vector<1x32xf32>, vector<1x32xf32>, vector<1x32xf32>, vector<1x32xf32> -> vector<8x32xf32>
    %cst_25 = arith.constant dense<0.000000e+00> : vector<8x128xf32>
    %156 = tpu.matmul %155, %3, %cst_25 {dimension_numbers = #tpu.dot_dimension_numbers<[1], [0], [0], [1], [0, 0, 1, 1], [], []>} : vector<8x32xf32>, vector<32x128xf32>, vector<8x128xf32> -> vector<8x128xf32>
    %157 = vector.broadcast %4 : vector<1x128xf32> to vector<8x128xf32>
    %158 = arith.addf %156, %157 : vector<8x128xf32>
    %cst_26 = arith.constant dense<0xFF800000> : vector<8xf32>
    %159 = vector.multi_reduction <maximumf>, %158, %cst_26 [1] : vector<8x128xf32> to vector<8xf32>
    %160 = vector.shape_cast %159 : vector<8xf32> to vector<8x1xf32>
    %161 = vector.broadcast %160 : vector<8x1xf32> to vector<8x128xf32>
    %162 = arith.subf %158, %161 : vector<8x128xf32>
    %163 = math.exp %162 : vector<8x128xf32>
    %cst_27 = arith.constant dense<0.000000e+00> : vector<8xf32>
    %164 = vector.multi_reduction <add>, %163, %cst_27 [1] : vector<8x128xf32> to vector<8xf32>
    %165 = vector.shape_cast %164 : vector<8xf32> to vector<8x1xf32>
    %166 = math.log %165 : vector<8x1xf32>
    %167 = vector.extract_strided_slice %162 {offsets = [0, 0], sizes = [8, 8], strides = [1, 1]} : vector<8x128xf32> to vector<8x8xf32>
    %168 = vector.broadcast %166 : vector<8x1xf32> to vector<8x8xf32>
    %169 = arith.subf %167, %168 : vector<8x8xf32>
    %c0_28 = arith.constant 0 : index
    %c0_29 = arith.constant 0 : index
    %170 = vector.load %arg2[%c0_28, %c0_29] : memref<8x8xf32, #tpu.memory_space<vmem>>, vector<8x8xf32>
    tpu.vector_store %arg2[%c0_28, %c0_29], %169 {strides = array<i32>} : memref<8x8xf32, #tpu.memory_space<vmem>>, vector<8x8xf32>,
    return
  }
}

</mosaic_0001>

<llo_original>
// kernel: lstm_tagger_forward.1
$region0: #{lstm_tagger_forward.1}
  #allocation0 [shape = 'u32[]', space=smem, size = 0x4, offset = 0x4, fixed_abs, tag = 'smem constant byte address 0x4 - core index']
  #allocation1 [shape = 'u32[144,128]{1,0:T(1,128)}', space=vmem, size = 0x12000, scoped, tag = 'internal scratch']
  %s0 = inlined_call_operand.hbm [shape: f32[8,32], index: 0, kind: input, shape index: {}]
  %s1 = inlined_call_operand.hbm [shape: f32[112,128], index: 1, kind: input, shape index: {}]
  %s2 = inlined_call_operand.hbm [shape: f32[8,8], index: 2, kind: output, shape index: {}]
  %s3 = sld [smem:[#allocation0]]
  $region26: #{lstm_tagger_forward.1} parent=0
    _
  %s5 = ssub.s32 1, %s3
  %s6 = scalar_select 0, %s5, %s3
  $region1: #{lstm_tagger_forward.1} parent=0
    #allocation2 [shape = 'u8[4096]{0}', space=vmem, size = 0x1000, scoped, tag = 'input window, operand 0, single buffered']
    #allocation3 [shape = 's32[1]{0}', space=sflag, size = 0x4, scoped, tag = 'scoped memory for lstm_tagger_forward.1']
    #allocation4 [shape = 's32[1]{0}', space=sflag, size = 0x4, scoped, tag = 'scoped memory for lstm_tagger_forward.1']
    #allocation5 [shape = 'u8[57344]{0}', space=vmem, size = 0xe000, scoped, tag = 'input window, operand 1, single buffered']
    #allocation6 [shape = 's32[1]{0}', space=sflag, size = 0x4, scoped, tag = 'scoped memory for lstm_tagger_forward.1']
    #allocation7 [shape = 'u8[4096]{0}', space=vmem, size = 0x1000, scoped, tag = 'output window, operand 0, single buffered']
    %7 = vsyncpa [#allocation3], 0
    %8 = vsyncpa [#allocation6], 0
    %9 = vsyncpa [#allocation4], 0
    // Predicated region
    $region2: #{lstm_tagger_forward.1} parent=1 // pred_check
      _
    $region3: #{lstm_tagger_forward.1} parent=1 // pred_check_branch
      %11 = sbr.rel (0) target = $region5
    $region4: #{lstm_tagger_forward.1} parent=1 // pred_region
      %s13 = ssub.s32 128, 128
      %14 = vsyncadd [#allocation3], %s13
      %s16 = sshll.u32 [#allocation2], 4
      %s17 = int_to_ptr.vmem [resolvable:$true] %s16
      %19 = dma.hbm_to_vmem [thread:$0]  %s0, 128, %s17, [#allocation3]
    $region5: #{lstm_tagger_forward.1} parent=1 // pred_fallthru
      _
    // Predicated region
    $region6: #{lstm_tagger_forward.1} parent=1 // pred_check
      _
    $region7: #{lstm_tagger_forward.1} parent=1 // pred_check_branch
      %21 = sbr.rel (0) target = $region9
    $region8: #{lstm_tagger_forward.1} parent=1 // pred_region
      %s23 = ssub.s32 1792, 1792
      %24 = vsyncadd [#allocation6], %s23
      %s25 = sshll.u32 [#allocation5], 4
      %s26 = int_to_ptr.vmem [resolvable:$true] %s25
      %31 = dma.hbm_to_vmem [thread:$0]  %s1, 1792, %s26, [#allocation6], 128, 128, 8
    $region9: #{lstm_tagger_forward.1} parent=1 // pred_fallthru
      _
    // Predicated region
    $region10: #{lstm_tagger_forward.1} parent=1 // pred_check
      _
    $region11: #{lstm_tagger_forward.1} parent=1 // pred_check_branch
      %33 = sbr.rel (0) target = $region13
    $region12: #{lstm_tagger_forward.1} parent=1 // pred_region
      %34 = dma.done [#allocation3], 128
    $region13: #{lstm_tagger_forward.1} parent=1 // pred_fallthru
      _
    // Predicated region
    $region14: #{lstm_tagger_forward.1} parent=1 // pred_check
      _
    $region15: #{lstm_tagger_forward.1} parent=1 // pred_check_branch
      %36 = sbr.rel (0) target = $region17
    $region16: #{lstm_tagger_forward.1} parent=1 // pred_region
      %37 = dma.done [#allocation6], 1792
    $region17: #{lstm_tagger_forward.1} parent=1 // pred_fallthru
      _
    %v38 = vld [vmem:[#allocation5] sm:$0xff]
    %v39 = vld [vmem:[#allocation5 + $0x8] sm:$0xff]
    %v40 = vld [vmem:[#allocation5 + $0x10] sm:$0xff]
    %v41 = vld [vmem:[#allocation5 + $0x18] sm:$0xff]
    %v42 = vld [vmem:[#allocation5 + $0x20] sm:$0xff]
    %v43 = vld [vmem:[#allocation5 + $0x28] sm:$0xff]
    %v44 = vld [vmem:[#allocation5 + $0x30] sm:$0xff]
    %v45 = vld [vmem:[#allocation5 + $0x38] sm:$0xff]
    %v46 = vld [vmem:[#allocation5 + $0x40] sm:$0x1]
    %v47 = vld [vmem:[#allocation5 + $0x48] sm:$0xff]
    %v48 = vld [vmem:[#allocation5 + $0x50] sm:$0xff]
    %v49 = vld [vmem:[#allocation5 + $0x58] sm:$0xff]
    %v50 = vld [vmem:[#allocation5 + $0x60] sm:$0xff]
    %v51 = vld [vmem:[#allocation5 + $0x68] sm:$0x1]
    %v52 = vld [vmem:[#allocation2] sm:$0xff]
    %v53 = vlaneseq
    %v54 = vshrl.u32 %v53, 7
    %v55 = vsub.s32 0, %v54
    %v56 = vrot.slane %v46, %v55
    %vm57 = vcmask 261120
    %v59 = vsel %vm57, %v52, 0
    %61 = vmatprep.subr.mxu0 0.0
    %62 = vmatpush1.msra.mxu0 0.0
    %63 = vmatprep.subr.mxu0 0.0
    %64 = vmatpush1.msra.mxu0 0.0
    %65 = vmatprep.subr.mxu0 0.0
    %66 = vmatpush1.msra.mxu0 0.0
    %67 = vmatprep.subr.mxu0 0.0
    %68 = vmatpush1.msra.mxu0 0.0
    %69 = vmatprep.subr.mxu0 0.0
    %70 = vmatpush1.msra.mxu0 0.0
    %71 = vmatprep.subr.mxu0 0.0
    %72 = vmatpush1.msra.mxu0 0.0
    %73 = vmatprep.subr.mxu0 0.0
    %74 = vmatpush1.msra.mxu0 0.0
    %75 = vmatprep.subr.mxu0 0.0
    %76 = vmatpush1.msra.mxu0 0.0
    %77 = vmatprep.subr.mxu0 0.0
    %78 = vmatpush1.msra.mxu0 0.0
    %79 = vmatprep.subr.mxu0 0.0
    %80 = vmatpush1.msra.mxu0 0.0
    %81 = vmatprep.subr.mxu0 0.0
    %82 = vmatpush1.msra.mxu0 0.0
    %83 = vmatprep.subr.mxu0 0.0
    %84 = vmatpush1.msra.mxu0 0.0
    %85 = vmatprep.subr.mxu0 0.0
    %86 = vmatpush1.msra.mxu0 %v41
    %87 = vmatprep.subr.mxu0 0.0
    %88 = vmatpush1.msra.mxu0 %v40
    %89 = vmatprep.subr.mxu0 0.0
    %90 = vmatpush1.msra.mxu0 %v39
    %91 = vmatprep.subr.mxu0 0.0
    %92 = vmatpush1.msra.mxu0 %v38
    %93 = vmatprep.subr.mxu0 0.0
    %94 = vmatpush2.msra.mxu0 0.0
    %95 = vmatprep.subr.mxu0 0.0
    %96 = vmatpush2.msra.mxu0 0.0
    %97 = vmatprep.subr.mxu0 0.0
    %98 = vmatpush2.msra.mxu0 0.0
    %99 = vmatprep.subr.mxu0 0.0
    %100 = vmatpush2.msra.mxu0 0.0
    %101 = vmatprep.subr.mxu0 0.0
    %102 = vmatpush2.msra.mxu0 0.0
    %103 = vmatprep.subr.mxu0 0.0
    %104 = vmatpush2.msra.mxu0 0.0
    %105 = vmatprep.subr.mxu0 0.0
    %106 = vmatpush2.msra.mxu0 0.0
    %107 = vmatprep.subr.mxu0 0.0
    %108 = vmatpush2.msra.mxu0 0.0
    %109 = vmatprep.subr.mxu0 0.0
    %110 = vmatpush2.msra.mxu0 0.0
    %111 = vmatprep.subr.mxu0 0.0
    %112 = vmatpush2.msra.mxu0 0.0
    %113 = vmatprep.subr.mxu0 0.0
    %114 = vmatpush2.msra.mxu0 0.0
    %115 = vmatprep.subr.mxu0 0.0
    %116 = vmatpush2.msra.mxu0 0.0
    %117 = vmatprep.subr.mxu0 0.0
    %118 = vmatpush2.msra.mxu0 0.0
    %119 = vmatprep.subr.mxu0 0.0
    %120 = vmatpush2.msra.mxu0 0.0
    %121 = vmatprep.subr.mxu0 0.0
    %122 = vmatpush2.msra.mxu0 0.0
    %123 = vmatprep.subr.mxu0 0.0
    %124 = vmatpush2.msra.mxu0 0.0
    %125 = vmatprep.mubr.f32.mxu0 0.0
    %126 = vmatmul.mubr.f32.gmra.mxu0 %v59
    %v127 = vpop.f32.mrf.mxu0
    %v128 = vadd.f32 %v56, %v127
    %v129 = vpop.f32.mrf.mxu0
    %130 = vdwg.mxu0
    %v132 = vsel %vm57, 0.0, 0
    %134 = vmatprep.subr.mxu0 0.0
    %135 = vmatpush1.msra.mxu0 0.0
    %136 = vmatprep.subr.mxu0 0.0
    %137 = vmatpush1.msra.mxu0 0.0
    %138 = vmatprep.subr.mxu0 0.0
    %139 = vmatpush1.msra.mxu0 0.0
    %140 = vmatprep.subr.mxu0 0.0
    %141 = vmatpush1.msra.mxu0 0.0
    %142 = vmatprep.subr.mxu0 0.0
    %143 = vmatpush1.msra.mxu0 0.0
    %144 = vmatprep.subr.mxu0 0.0
    %145 = vmatpush1.msra.mxu0 0.0
    %146 = vmatprep.subr.mxu0 0.0
    %147 = vmatpush1.msra.mxu0 0.0
    %148 = vmatprep.subr.mxu0 0.0
    %149 = vmatpush1.msra.mxu0 0.0
    %150 = vmatprep.subr.mxu0 0.0
    %151 = vmatpush1.msra.mxu0 0.0
    %152 = vmatprep.subr.mxu0 0.0
    %153 = vmatpush1.msra.mxu0 0.0
    %154 = vmatprep.subr.mxu0 0.0
    %155 = vmatpush1.msra.mxu0 0.0
    %156 = vmatprep.subr.mxu0 0.0
    %157 = vmatpush1.msra.mxu0 0.0
    %158 = vmatprep.subr.mxu0 0.0
    %159 = vmatpush1.msra.mxu0 %v45
    %160 = vmatprep.subr.mxu0 0.0
    %161 = vmatpush1.msra.mxu0 %v44
    %162 = vmatprep.subr.mxu0 0.0
    %163 = vmatpush1.msra.mxu0 %v43
    %164 = vmatprep.subr.mxu0 0.0
    %165 = vmatpush1.msra.mxu0 %v42
    %166 = vmatprep.subr.mxu0 0.0
    %167 = vmatpush2.msra.mxu0 0.0
    %168 = vmatprep.subr.mxu0 0.0
    %169 = vmatpush2.msra.mxu0 0.0
    %170 = vmatprep.subr.mxu0 0.0
    %171 = vmatpush2.msra.mxu0 0.0
    %172 = vmatprep.subr.mxu0 0.0
    %173 = vmatpush2.msra.mxu0 0.0
    %174 = vmatprep.subr.mxu0 0.0
    %175 = vmatpush2.msra.mxu0 0.0
    %176 = vmatprep.subr.mxu0 0.0
    %177 = vmatpush2.msra.mxu0 0.0
    %178 = vmatprep.subr.mxu0 0.0
    %179 = vmatpush2.msra.mxu0 0.0
    %180 = vmatprep.subr.mxu0 0.0
    %181 = vmatpush2.msra.mxu0 0.0
    %182 = vmatprep.subr.mxu0 0.0
    %183 = vmatpush2.msra.mxu0 0.0
    %184 = vmatprep.subr.mxu0 0.0
    %185 = vmatpush2.msra.mxu0 0.0
    %186 = vmatprep.subr.mxu0 0.0
    %187 = vmatpush2.msra.mxu0 0.0
    %188 = vmatprep.subr.mxu0 0.0
    %189 = vmatpush2.msra.mxu0 0.0
    %190 = vmatprep.subr.mxu0 0.0
    %191 = vmatpush2.msra.mxu0 0.0
    %192 = vmatprep.subr.mxu0 0.0
    %193 = vmatpush2.msra.mxu0 0.0
    %194 = vmatprep.subr.mxu0 0.0
    %195 = vmatpush2.msra.mxu0 0.0
    %196 = vmatprep.subr.mxu0 0.0
    %197 = vmatpush2.msra.mxu0 0.0
    %198 = vmatprep.mubr.f32.mxu0 0.0
    %199 = vmatmul.mubr.f32.gmra.mxu0 %v132
    %v200 = vpop.f32.mrf.mxu0
    %v201 = vadd.f32 0.0, %v200
    %v202 = vpop.f32.mrf.mxu0
    %203 = vdwg.mxu0
    %v204 = vadd.f32 %v128, %v201
    %v205 = vxor.u32 %v204, 2147483648
    %v206 = vmul.f32 %v205, 1.442695
    %v207 = vpow.pop %v206
    %v208 = vadd.f32 %v207, 1.0
    %v209 = vrcp.pop %v208
    %v210 = vmul.f32 1.0, %v209
    %v211 = vtanh.pop %v204
    %v212 = vmul.f32 %v210, 0.0
    %214 = vrot.lane.b32.xlu0 %v211, 64
    %v215 = vpop.permute.xlu0 %214
    %v217 = vmul.f32 %v210, %v215
    %219 = vrot.lane.b32.xlu0 %v217, 32
    %v220 = vpop.permute.xlu0 %219
    %v222 = vadd.f32 %v212, %v220
    %v223 = vtanh.pop %v222
    %225 = vrot.lane.b32.xlu0 %v223, 64
    %v226 = vpop.permute.xlu0 %225
    %v228 = vmul.f32 %v210, %v226
    %230 = vrot.lane.b32.xlu0 %v228, 32
    %v231 = vpop.permute.xlu0 %230
    %v232 = vsel %vm57, %v231, 0
    %234 = vmatprep.subr.mxu0 0.0
    %235 = vmatpush1.msra.mxu0 0.0
    %236 = vmatprep.subr.mxu0 0.0
    %237 = vmatpush1.msra.mxu0 0.0
    %238 = vmatprep.subr.mxu0 0.0
    %239 = vmatpush1.msra.mxu0 0.0
    %240 = vmatprep.subr.mxu0 0.0
    %241 = vmatpush1.msra.mxu0 0.0
    %242 = vmatprep.subr.mxu0 0.0
    %243 = vmatpush1.msra.mxu0 0.0
    %244 = vmatprep.subr.mxu0 0.0
    %245 = vmatpush1.msra.mxu0 0.0
    %246 = vmatprep.subr.mxu0 0.0
    %247 = vmatpush1.msra.mxu0 0.0
    %248 = vmatprep.subr.mxu0 0.0
    %249 = vmatpush1.msra.mxu0 0.0
    %250 = vmatprep.subr.mxu0 0.0
    %251 = vmatpush1.msra.mxu0 0.0
    %252 = vmatprep.subr.mxu0 0.0
    %253 = vmatpush1.msra.mxu0 0.0
    %254 = vmatprep.subr.mxu0 0.0
    %255 = vmatpush1.msra.mxu0 0.0
    %256 = vmatprep.subr.mxu0 0.0
    %257 = vmatpush1.msra.mxu0 0.0
    %258 = vmatprep.subr.mxu0 0.0
    %259 = vmatpush1.msra.mxu0 %v45
    %260 = vmatprep.subr.mxu0 0.0
    %261 = vmatpush1.msra.mxu0 %v44
    %262 = vmatprep.subr.mxu0 0.0
    %263 = vmatpush1.msra.mxu0 %v43
    %264 = vmatprep.subr.mxu0 0.0
    %265 = vmatpush1.msra.mxu0 %v42
    %266 = vmatprep.subr.mxu0 0.0
    %267 = vmatpush2.msra.mxu0 0.0
    %268 = vmatprep.subr.mxu0 0.0
    %269 = vmatpush2.msra.mxu0 0.0
    %270 = vmatprep.subr.mxu0 0.0
    %271 = vmatpush2.msra.mxu0 0.0
    %272 = vmatprep.subr.mxu0 0.0
    %273 = vmatpush2.msra.mxu0 0.0
    %274 = vmatprep.subr.mxu0 0.0
    %275 = vmatpush2.msra.mxu0 0.0
    %276 = vmatprep.subr.mxu0 0.0
    %277 = vmatpush2.msra.mxu0 0.0
    %278 = vmatprep.subr.mxu0 0.0
    %279 = vmatpush2.msra.mxu0 0.0
    %280 = vmatprep.subr.mxu0 0.0
    %281 = vmatpush2.msra.mxu0 0.0
    %282 = vmatprep.subr.mxu0 0.0
    %283 = vmatpush2.msra.mxu0 0.0
    %284 = vmatprep.subr.mxu0 0.0
    %285 = vmatpush2.msra.mxu0 0.0
    %286 = vmatprep.subr.mxu0 0.0
    %287 = vmatpush2.msra.mxu0 0.0
    %288 = vmatprep.subr.mxu0 0.0
    %289 = vmatpush2.msra.mxu0 0.0
    %290 = vmatprep.subr.mxu0 0.0
    %291 = vmatpush2.msra.mxu0 0.0
    %292 = vmatprep.subr.mxu0 0.0
    %293 = vmatpush2.msra.mxu0 0.0
    %294 = vmatprep.subr.mxu0 0.0
    %295 = vmatpush2.msra.mxu0 0.0
    %296 = vmatprep.subr.mxu0 0.0
    %297 = vmatpush2.msra.mxu0 0.0
    %298 = vmatprep.mubr.f32.mxu0 0.0
    %299 = vmatmul.mubr.f32.gmra.mxu0 %v232
    %v300 = vpop.f32.mrf.mxu0
    %v301 = vadd.f32 0.0, %v300
    %v302 = vpop.f32.mrf.mxu0
    %303 = vdwg.mxu0
    %v305 = vrot.slane %v301, 7
    %v307 = vadd.f32 %v128, %v305
    %v308 = vxor.u32 %v307, 2147483648
    %v309 = vmul.f32 %v308, 1.442695
    %v310 = vpow.pop %v309
    %v311 = vadd.f32 %v310, 1.0
    %v312 = vrcp.pop %v311
    %v313 = vmul.f32 1.0, %v312
    %v314 = vtanh.pop %v307
    %v316 = vrot.slane %v222, 7
    %v318 = vmul.f32 %v313, %v316
    %320 = vrot.lane.b32.xlu0 %v314, 64
    %v321 = vpop.permute.xlu0 %320
    %v323 = vmul.f32 %v313, %v321
    %325 = vrot.lane.b32.xlu0 %v323, 32
    %v326 = vpop.permute.xlu0 %325
    %v328 = vadd.f32 %v318, %v326
    %v329 = vtanh.pop %v328
    %331 = vrot.lane.b32.xlu0 %v329, 64
    %v332 = vpop.permute.xlu0 %331
    %v334 = vmul.f32 %v313, %v332
    %v336 = vrot.slane %v334, 1
    %337 = vrot.lane.b32.xlu0 %v336, 32
    %v338 = vpop.permute.xlu0 %337
    %v339 = vsel %vm57, %v338, 0
    %341 = vmatprep.subr.mxu0 0.0
    %342 = vmatpush1.msra.mxu0 0.0
    %343 = vmatprep.subr.mxu0 0.0
    %344 = vmatpush1.msra.mxu0 0.0
    %345 = vmatprep.subr.mxu0 0.0
    %346 = vmatpush1.msra.mxu0 0.0
    %347 = vmatprep.subr.mxu0 0.0
    %348 = vmatpush1.msra.mxu0 0.0
    %349 = vmatprep.subr.mxu0 0.0
    %350 = vmatpush1.msra.mxu0 0.0
    %351 = vmatprep.subr.mxu0 0.0
    %352 = vmatpush1.msra.mxu0 0.0
    %353 = vmatprep.subr.mxu0 0.0
    %354 = vmatpush1.msra.mxu0 0.0
    %355 = vmatprep.subr.mxu0 0.0
    %356 = vmatpush1.msra.mxu0 0.0
    %357 = vmatprep.subr.mxu0 0.0
    %358 = vmatpush1.msra.mxu0 0.0
    %359 = vmatprep.subr.mxu0 0.0
    %360 = vmatpush1.msra.mxu0 0.0
    %361 = vmatprep.subr.mxu0 0.0
    %362 = vmatpush1.msra.mxu0 0.0
    %363 = vmatprep.subr.mxu0 0.0
    %364 = vmatpush1.msra.mxu0 0.0
    %365 = vmatprep.subr.mxu0 0.0
    %366 = vmatpush1.msra.mxu0 %v45
    %367 = vmatprep.subr.mxu0 0.0
    %368 = vmatpush1.msra.mxu0 %v44
    %369 = vmatprep.subr.mxu0 0.0
    %370 = vmatpush1.msra.mxu0 %v43
    %371 = vmatprep.subr.mxu0 0.0
    %372 = vmatpush1.msra.mxu0 %v42
    %373 = vmatprep.subr.mxu0 0.0
    %374 = vmatpush2.msra.mxu0 0.0
    %375 = vmatprep.subr.mxu0 0.0
    %376 = vmatpush2.msra.mxu0 0.0
    %377 = vmatprep.subr.mxu0 0.0
    %378 = vmatpush2.msra.mxu0 0.0
    %379 = vmatprep.subr.mxu0 0.0
    %380 = vmatpush2.msra.mxu0 0.0
    %381 = vmatprep.subr.mxu0 0.0
    %382 = vmatpush2.msra.mxu0 0.0
    %383 = vmatprep.subr.mxu0 0.0
    %384 = vmatpush2.msra.mxu0 0.0
    %385 = vmatprep.subr.mxu0 0.0
    %386 = vmatpush2.msra.mxu0 0.0
    %387 = vmatprep.subr.mxu0 0.0
    %388 = vmatpush2.msra.mxu0 0.0
    %389 = vmatprep.subr.mxu0 0.0
    %390 = vmatpush2.msra.mxu0 0.0
    %391 = vmatprep.subr.mxu0 0.0
    %392 = vmatpush2.msra.mxu0 0.0
    %393 = vmatprep.subr.mxu0 0.0
    %394 = vmatpush2.msra.mxu0 0.0
    %395 = vmatprep.subr.mxu0 0.0
    %396 = vmatpush2.msra.mxu0 0.0
    %397 = vmatprep.subr.mxu0 0.0
    %398 = vmatpush2.msra.mxu0 0.0
    %399 = vmatprep.subr.mxu0 0.0
    %400 = vmatpush2.msra.mxu0 0.0
    %401 = vmatprep.subr.mxu0 0.0
    %402 = vmatpush2.msra.mxu0 0.0
    %403 = vmatprep.subr.mxu0 0.0
    %404 = vmatpush2.msra.mxu0 0.0
    %405 = vmatprep.mubr.f32.mxu0 0.0
    %406 = vmatmul.mubr.f32.gmra.mxu0 %v339
    %v407 = vpop.f32.mrf.mxu0
    %v408 = vadd.f32 0.0, %v407
    %v409 = vpop.f32.mrf.mxu0
    %410 = vdwg.mxu0
    %v412 = vrot.slane %v408, 6
    %v414 = vadd.f32 %v128, %v412
    %v415 = vxor.u32 %v414, 2147483648
    %v416 = vmul.f32 %v415, 1.442695
    %v417 = vpow.pop %v416
    %v418 = vadd.f32 %v417, 1.0
    %v419 = vrcp.pop %v418
    %v420 = vmul.f32 1.0, %v419
    %v421 = vtanh.pop %v414
    %v423 = vrot.slane %v328, 7
    %v425 = vmul.f32 %v420, %v423
    %427 = vrot.lane.b32.xlu0 %v421, 64
    %v428 = vpop.permute.xlu0 %427
    %v430 = vmul.f32 %v420, %v428
    %432 = vrot.lane.b32.xlu0 %v430, 32
    %v433 = vpop.permute.xlu0 %432
    %v435 = vadd.f32 %v425, %v433
    %v436 = vtanh.pop %v435
    %438 = vrot.lane.b32.xlu0 %v436, 64
    %v439 = vpop.permute.xlu0 %438
    %v441 = vmul.f32 %v420, %v439
    %v443 = vrot.slane %v441, 2
    %444 = vrot.lane.b32.xlu0 %v443, 32
    %v445 = vpop.permute.xlu0 %444
    %v446 = vsel %vm57, %v445, 0
    %448 = vmatprep.subr.mxu0 0.0
    %449 = vmatpush1.msra.mxu0 0.0
    %450 = vmatprep.subr.mxu0 0.0
    %451 = vmatpush1.msra.mxu0 0.0
    %452 = vmatprep.subr.mxu0 0.0
    %453 = vmatpush1.msra.mxu0 0.0
    %454 = vmatprep.subr.mxu0 0.0
    %455 = vmatpush1.msra.mxu0 0.0
    %456 = vmatprep.subr.mxu0 0.0
    %457 = vmatpush1.msra.mxu0 0.0
    %458 = vmatprep.subr.mxu0 0.0
    %459 = vmatpush1.msra.mxu0 0.0
    %460 = vmatprep.subr.mxu0 0.0
    %461 = vmatpush1.msra.mxu0 0.0
    %462 = vmatprep.subr.mxu0 0.0
    %463 = vmatpush1.msra.mxu0 0.0
    %464 = vmatprep.subr.mxu0 0.0
    %465 = vmatpush1.msra.mxu0 0.0
    %466 = vmatprep.subr.mxu0 0.0
    %467 = vmatpush1.msra.mxu0 0.0
    %468 = vmatprep.subr.mxu0 0.0
    %469 = vmatpush1.msra.mxu0 0.0
    %470 = vmatprep.subr.mxu0 0.0
    %471 = vmatpush1.msra.mxu0 0.0
    %472 = vmatprep.subr.mxu0 0.0
    %473 = vmatpush1.msra.mxu0 %v45
    %474 = vmatprep.subr.mxu0 0.0
    %475 = vmatpush1.msra.mxu0 %v44
    %476 = vmatprep.subr.mxu0 0.0
    %477 = vmatpush1.msra.mxu0 %v43
    %478 = vmatprep.subr.mxu0 0.0
    %479 = vmatpush1.msra.mxu0 %v42
    %480 = vmatprep.subr.mxu0 0.0
    %481 = vmatpush2.msra.mxu0 0.0
    %482 = vmatprep.subr.mxu0 0.0
    %483 = vmatpush2.msra.mxu0 0.0
    %484 = vmatprep.subr.mxu0 0.0
    %485 = vmatpush2.msra.mxu0 0.0
    %486 = vmatprep.subr.mxu0 0.0
    %487 = vmatpush2.msra.mxu0 0.0
    %488 = vmatprep.subr.mxu0 0.0
    %489 = vmatpush2.msra.mxu0 0.0
    %490 = vmatprep.subr.mxu0 0.0
    %491 = vmatpush2.msra.mxu0 0.0
    %492 = vmatprep.subr.mxu0 0.0
    %493 = vmatpush2.msra.mxu0 0.0
    %494 = vmatprep.subr.mxu0 0.0
    %495 = vmatpush2.msra.mxu0 0.0
    %496 = vmatprep.subr.mxu0 0.0
    %497 = vmatpush2.msra.mxu0 0.0
    %498 = vmatprep.subr.mxu0 0.0
    %499 = vmatpush2.msra.mxu0 0.0
    %500 = vmatprep.subr.mxu0 0.0
    %501 = vmatpush2.msra.mxu0 0.0
    %502 = vmatprep.subr.mxu0 0.0
    %503 = vmatpush2.msra.mxu0 0.0
    %504 = vmatprep.subr.mxu0 0.0
    %505 = vmatpush2.msra.mxu0 0.0
    %506 = vmatprep.subr.mxu0 0.0
    %507 = vmatpush2.msra.mxu0 0.0
    %508 = vmatprep.subr.mxu0 0.0
    %509 = vmatpush2.msra.mxu0 0.0
    %510 = vmatprep.subr.mxu0 0.0
    %511 = vmatpush2.msra.mxu0 0.0
    %512 = vmatprep.mubr.f32.mxu0 0.0
    %513 = vmatmul.mubr.f32.gmra.mxu0 %v446
    %v514 = vpop.f32.mrf.mxu0
    %v515 = vadd.f32 0.0, %v514
    %v516 = vpop.f32.mrf.mxu0
    %517 = vdwg.mxu0
    %v519 = vrot.slane %v515, 5
    %v521 = vadd.f32 %v128, %v519
    %v522 = vxor.u32 %v521, 2147483648
    %v523 = vmul.f32 %v522, 1.442695
    %v524 = vpow.pop %v523
    %v525 = vadd.f32 %v524, 1.0
    %v526 = vrcp.pop %v525
    %v527 = vmul.f32 1.0, %v526
    %v528 = vtanh.pop %v521
    %v530 = vrot.slane %v435, 7
    %v532 = vmul.f32 %v527, %v530
    %534 = vrot.lane.b32.xlu0 %v528, 64
    %v535 = vpop.permute.xlu0 %534
    %v537 = vmul.f32 %v527, %v535
    %539 = vrot.lane.b32.xlu0 %v537, 32
    %v540 = vpop.permute.xlu0 %539
    %v542 = vadd.f32 %v532, %v540
    %v543 = vtanh.pop %v542
    %545 = vrot.lane.b32.xlu0 %v543, 64
    %v546 = vpop.permute.xlu0 %545
    %v548 = vmul.f32 %v527, %v546
    %v550 = vrot.slane %v548, 3
    %551 = vrot.lane.b32.xlu0 %v550, 32
    %v552 = vpop.permute.xlu0 %551
    %v553 = vsel %vm57, %v552, 0
    %555 = vmatprep.subr.mxu0 0.0
    %556 = vmatpush1.msra.mxu0 0.0
    %557 = vmatprep.subr.mxu0 0.0
    %558 = vmatpush1.msra.mxu0 0.0
    %559 = vmatprep.subr.mxu0 0.0
    %560 = vmatpush1.msra.mxu0 0.0
    %561 = vmatprep.subr.mxu0 0.0
    %562 = vmatpush1.msra.mxu0 0.0
    %563 = vmatprep.subr.mxu0 0.0
    %564 = vmatpush1.msra.mxu0 0.0
    %565 = vmatprep.subr.mxu0 0.0
    %566 = vmatpush1.msra.mxu0 0.0
    %567 = vmatprep.subr.mxu0 0.0
    %568 = vmatpush1.msra.mxu0 0.0
    %569 = vmatprep.subr.mxu0 0.0
    %570 = vmatpush1.msra.mxu0 0.0
    %571 = vmatprep.subr.mxu0 0.0
    %572 = vmatpush1.msra.mxu0 0.0
    %573 = vmatprep.subr.mxu0 0.0
    %574 = vmatpush1.msra.mxu0 0.0
    %575 = vmatprep.subr.mxu0 0.0
    %576 = vmatpush1.msra.mxu0 0.0
    %577 = vmatprep.subr.mxu0 0.0
    %578 = vmatpush1.msra.mxu0 0.0
    %579 = vmatprep.subr.mxu0 0.0
    %580 = vmatpush1.msra.mxu0 %v45
    %581 = vmatprep.subr.mxu0 0.0
    %582 = vmatpush1.msra.mxu0 %v44
    %583 = vmatprep.subr.mxu0 0.0
    %584 = vmatpush1.msra.mxu0 %v43
    %585 = vmatprep.subr.mxu0 0.0
    %586 = vmatpush1.msra.mxu0 %v42
    %587 = vmatprep.subr.mxu0 0.0
    %588 = vmatpush2.msra.mxu0 0.0
    %589 = vmatprep.subr.mxu0 0.0
    %590 = vmatpush2.msra.mxu0 0.0
    %591 = vmatprep.subr.mxu0 0.0
    %592 = vmatpush2.msra.mxu0 0.0
    %593 = vmatprep.subr.mxu0 0.0
    %594 = vmatpush2.msra.mxu0 0.0
    %595 = vmatprep.subr.mxu0 0.0
    %596 = vmatpush2.msra.mxu0 0.0
    %597 = vmatprep.subr.mxu0 0.0
    %598 = vmatpush2.msra.mxu0 0.0
    %599 = vmatprep.subr.mxu0 0.0
    %600 = vmatpush2.msra.mxu0 0.0
    %601 = vmatprep.subr.mxu0 0.0
    %602 = vmatpush2.msra.mxu0 0.0
    %603 = vmatprep.subr.mxu0 0.0
    %604 = vmatpush2.msra.mxu0 0.0
    %605 = vmatprep.subr.mxu0 0.0
    %606 = vmatpush2.msra.mxu0 0.0
    %607 = vmatprep.subr.mxu0 0.0
    %608 = vmatpush2.msra.mxu0 0.0
    %609 = vmatprep.subr.mxu0 0.0
    %610 = vmatpush2.msra.mxu0 0.0
    %611 = vmatprep.subr.mxu0 0.0
    %612 = vmatpush2.msra.mxu0 0.0
    %613 = vmatprep.subr.mxu0 0.0
    %614 = vmatpush2.msra.mxu0 0.0
    %615 = vmatprep.subr.mxu0 0.0
    %616 = vmatpush2.msra.mxu0 0.0
    %617 = vmatprep.subr.mxu0 0.0
    %618 = vmatpush2.msra.mxu0 0.0
    %619 = vmatprep.mubr.f32.mxu0 0.0
    %620 = vmatmul.mubr.f32.gmra.mxu0 %v553
    %v621 = vpop.f32.mrf.mxu0
    %v622 = vadd.f32 0.0, %v621
    %v623 = vpop.f32.mrf.mxu0
    %624 = vdwg.mxu0
    %v626 = vrot.slane %v622, 4
    %v628 = vadd.f32 %v128, %v626
    %v629 = vxor.u32 %v628, 2147483648
    %v630 = vmul.f32 %v629, 1.442695
    %v631 = vpow.pop %v630
    %v632 = vadd.f32 %v631, 1.0
    %v633 = vrcp.pop %v632
    %v634 = vmul.f32 1.0, %v633
    %v635 = vtanh.pop %v628
    %v637 = vrot.slane %v542, 7
    %v639 = vmul.f32 %v634, %v637
    %641 = vrot.lane.b32.xlu0 %v635, 64
    %v642 = vpop.permute.xlu0 %641
    %v644 = vmul.f32 %v634, %v642
    %646 = vrot.lane.b32.xlu0 %v644, 32
    %v647 = vpop.permute.xlu0 %646
    %v649 = vadd.f32 %v639, %v647
    %v650 = vtanh.pop %v649
    %652 = vrot.lane.b32.xlu0 %v650, 64
    %v653 = vpop.permute.xlu0 %652
    %v655 = vmul.f32 %v634, %v653
    %v657 = vrot.slane %v655, 4
    %658 = vrot.lane.b32.xlu0 %v657, 32
    %v659 = vpop.permute.xlu0 %658
    %v660 = vsel %vm57, %v659, 0
    %662 = vmatprep.subr.mxu0 0.0
    %663 = vmatpush1.msra.mxu0 0.0
    %664 = vmatprep.subr.mxu0 0.0
    %665 = vmatpush1.msra.mxu0 0.0
    %666 = vmatprep.subr.mxu0 0.0
    %667 = vmatpush1.msra.mxu0 0.0
    %668 = vmatprep.subr.mxu0 0.0
    %669 = vmatpush1.msra.mxu0 0.0
    %670 = vmatprep.subr.mxu0 0.0
    %671 = vmatpush1.msra.mxu0 0.0
    %672 = vmatprep.subr.mxu0 0.0
    %673 = vmatpush1.msra.mxu0 0.0
    %674 = vmatprep.subr.mxu0 0.0
    %675 = vmatpush1.msra.mxu0 0.0
    %676 = vmatprep.subr.mxu0 0.0
    %677 = vmatpush1.msra.mxu0 0.0
    %678 = vmatprep.subr.mxu0 0.0
    %679 = vmatpush1.msra.mxu0 0.0
    %680 = vmatprep.subr.mxu0 0.0
    %681 = vmatpush1.msra.mxu0 0.0
    %682 = vmatprep.subr.mxu0 0.0
    %683 = vmatpush1.msra.mxu0 0.0
    %684 = vmatprep.subr.mxu0 0.0
    %685 = vmatpush1.msra.mxu0 0.0
    %686 = vmatprep.subr.mxu0 0.0
    %687 = vmatpush1.msra.mxu0 %v45
    %688 = vmatprep.subr.mxu0 0.0
    %689 = vmatpush1.msra.mxu0 %v44
    %690 = vmatprep.subr.mxu0 0.0
    %691 = vmatpush1.msra.mxu0 %v43
    %692 = vmatprep.subr.mxu0 0.0
    %693 = vmatpush1.msra.mxu0 %v42
    %694 = vmatprep.subr.mxu0 0.0
    %695 = vmatpush2.msra.mxu0 0.0
    %696 = vmatprep.subr.mxu0 0.0
    %697 = vmatpush2.msra.mxu0 0.0
    %698 = vmatprep.subr.mxu0 0.0
    %699 = vmatpush2.msra.mxu0 0.0
    %700 = vmatprep.subr.mxu0 0.0
    %701 = vmatpush2.msra.mxu0 0.0
    %702 = vmatprep.subr.mxu0 0.0
    %703 = vmatpush2.msra.mxu0 0.0
    %704 = vmatprep.subr.mxu0 0.0
    %705 = vmatpush2.msra.mxu0 0.0
    %706 = vmatprep.subr.mxu0 0.0
    %707 = vmatpush2.msra.mxu0 0.0
    %708 = vmatprep.subr.mxu0 0.0
    %709 = vmatpush2.msra.mxu0 0.0
    %710 = vmatprep.subr.mxu0 0.0
    %711 = vmatpush2.msra.mxu0 0.0
    %712 = vmatprep.subr.mxu0 0.0
    %713 = vmatpush2.msra.mxu0 0.0
    %714 = vmatprep.subr.mxu0 0.0
    %715 = vmatpush2.msra.mxu0 0.0
    %716 = vmatprep.subr.mxu0 0.0
    %717 = vmatpush2.msra.mxu0 0.0
    %718 = vmatprep.subr.mxu0 0.0
    %719 = vmatpush2.msra.mxu0 0.0
    %720 = vmatprep.subr.mxu0 0.0
    %721 = vmatpush2.msra.mxu0 0.0
    %722 = vmatprep.subr.mxu0 0.0
    %723 = vmatpush2.msra.mxu0 0.0
    %724 = vmatprep.subr.mxu0 0.0
    %725 = vmatpush2.msra.mxu0 0.0
    %726 = vmatprep.mubr.f32.mxu0 0.0
    %727 = vmatmul.mubr.f32.gmra.mxu0 %v660
    %v728 = vpop.f32.mrf.mxu0
    %v729 = vadd.f32 0.0, %v728
    %v730 = vpop.f32.mrf.mxu0
    %731 = vdwg.mxu0
    %v733 = vrot.slane %v729, 3
    %v735 = vadd.f32 %v128, %v733
    %v736 = vxor.u32 %v735, 2147483648
    %v737 = vmul.f32 %v736, 1.442695
    %v738 = vpow.pop %v737
    %v739 = vadd.f32 %v738, 1.0
    %v740 = vrcp.pop %v739
    %v741 = vmul.f32 1.0, %v740
    %v742 = vtanh.pop %v735
    %v744 = vrot.slane %v649, 7
    %v746 = vmul.f32 %v741, %v744
    %748 = vrot.lane.b32.xlu0 %v742, 64
    %v749 = vpop.permute.xlu0 %748
    %v751 = vmul.f32 %v741, %v749
    %753 = vrot.lane.b32.xlu0 %v751, 32
    %v754 = vpop.permute.xlu0 %753
    %v756 = vadd.f32 %v746, %v754
    %v757 = vtanh.pop %v756
    %759 = vrot.lane.b32.xlu0 %v757, 64
    %v760 = vpop.permute.xlu0 %759
    %v762 = vmul.f32 %v741, %v760
    %v764 = vrot.slane %v762, 5
    %765 = vrot.lane.b32.xlu0 %v764, 32
    %v766 = vpop.permute.xlu0 %765
    %v767 = vsel %vm57, %v766, 0
    %769 = vmatprep.subr.mxu0 0.0
    %770 = vmatpush1.msra.mxu0 0.0
    %771 = vmatprep.subr.mxu0 0.0
    %772 = vmatpush1.msra.mxu0 0.0
    %773 = vmatprep.subr.mxu0 0.0
    %774 = vmatpush1.msra.mxu0 0.0
    %775 = vmatprep.subr.mxu0 0.0
    %776 = vmatpush1.msra.mxu0 0.0
    %777 = vmatprep.subr.mxu0 0.0
    %778 = vmatpush1.msra.mxu0 0.0
    %779 = vmatprep.subr.mxu0 0.0
    %780 = vmatpush1.msra.mxu0 0.0
    %781 = vmatprep.subr.mxu0 0.0
    %782 = vmatpush1.msra.mxu0 0.0
    %783 = vmatprep.subr.mxu0 0.0
    %784 = vmatpush1.msra.mxu0 0.0
    %785 = vmatprep.subr.mxu0 0.0
    %786 = vmatpush1.msra.mxu0 0.0
    %787 = vmatprep.subr.mxu0 0.0
    %788 = vmatpush1.msra.mxu0 0.0
    %789 = vmatprep.subr.mxu0 0.0
    %790 = vmatpush1.msra.mxu0 0.0
    %791 = vmatprep.subr.mxu0 0.0
    %792 = vmatpush1.msra.mxu0 0.0
    %793 = vmatprep.subr.mxu0 0.0
    %794 = vmatpush1.msra.mxu0 %v45
    %795 = vmatprep.subr.mxu0 0.0
    %796 = vmatpush1.msra.mxu0 %v44
    %797 = vmatprep.subr.mxu0 0.0
    %798 = vmatpush1.msra.mxu0 %v43
    %799 = vmatprep.subr.mxu0 0.0
    %800 = vmatpush1.msra.mxu0 %v42
    %801 = vmatprep.subr.mxu0 0.0
    %802 = vmatpush2.msra.mxu0 0.0
    %803 = vmatprep.subr.mxu0 0.0
    %804 = vmatpush2.msra.mxu0 0.0
    %805 = vmatprep.subr.mxu0 0.0
    %806 = vmatpush2.msra.mxu0 0.0
    %807 = vmatprep.subr.mxu0 0.0
    %808 = vmatpush2.msra.mxu0 0.0
    %809 = vmatprep.subr.mxu0 0.0
    %810 = vmatpush2.msra.mxu0 0.0
    %811 = vmatprep.subr.mxu0 0.0
    %812 = vmatpush2.msra.mxu0 0.0
    %813 = vmatprep.subr.mxu0 0.0
    %814 = vmatpush2.msra.mxu0 0.0
    %815 = vmatprep.subr.mxu0 0.0
    %816 = vmatpush2.msra.mxu0 0.0
    %817 = vmatprep.subr.mxu0 0.0
    %818 = vmatpush2.msra.mxu0 0.0
    %819 = vmatprep.subr.mxu0 0.0
    %820 = vmatpush2.msra.mxu0 0.0
    %821 = vmatprep.subr.mxu0 0.0
    %822 = vmatpush2.msra.mxu0 0.0
    %823 = vmatprep.subr.mxu0 0.0
    %824 = vmatpush2.msra.mxu0 0.0
    %825 = vmatprep.subr.mxu0 0.0
    %826 = vmatpush2.msra.mxu0 0.0
    %827 = vmatprep.subr.mxu0 0.0
    %828 = vmatpush2.msra.mxu0 0.0
    %829 = vmatprep.subr.mxu0 0.0
    %830 = vmatpush2.msra.mxu0 0.0
    %831 = vmatprep.subr.mxu0 0.0
    %832 = vmatpush2.msra.mxu0 0.0
    %833 = vmatprep.mubr.f32.mxu0 0.0
    %834 = vmatmul.mubr.f32.gmra.mxu0 %v767
    %v835 = vpop.f32.mrf.mxu0
    %v836 = vadd.f32 0.0, %v835
    %v837 = vpop.f32.mrf.mxu0
    %838 = vdwg.mxu0
    %v840 = vrot.slane %v836, 2
    %v842 = vadd.f32 %v128, %v840
    %v843 = vxor.u32 %v842, 2147483648
    %v844 = vmul.f32 %v843, 1.442695
    %v845 = vpow.pop %v844
    %v846 = vadd.f32 %v845, 1.0
    %v847 = vrcp.pop %v846
    %v848 = vmul.f32 1.0, %v847
    %v849 = vtanh.pop %v842
    %v851 = vrot.slane %v756, 7
    %v853 = vmul.f32 %v848, %v851
    %855 = vrot.lane.b32.xlu0 %v849, 64
    %v856 = vpop.permute.xlu0 %855
    %v858 = vmul.f32 %v848, %v856
    %860 = vrot.lane.b32.xlu0 %v858, 32
    %v861 = vpop.permute.xlu0 %860
    %v863 = vadd.f32 %v853, %v861
    %v864 = vtanh.pop %v863
    %866 = vrot.lane.b32.xlu0 %v864, 64
    %v867 = vpop.permute.xlu0 %866
    %v869 = vmul.f32 %v848, %v867
    %v871 = vrot.slane %v869, 6
    %872 = vrot.lane.b32.xlu0 %v871, 32
    %v873 = vpop.permute.xlu0 %872
    %v874 = vsel %vm57, %v873, 0
    %876 = vmatprep.subr.mxu0 0.0
    %877 = vmatpush1.msra.mxu0 0.0
    %878 = vmatprep.subr.mxu0 0.0
    %879 = vmatpush1.msra.mxu0 0.0
    %880 = vmatprep.subr.mxu0 0.0
    %881 = vmatpush1.msra.mxu0 0.0
    %882 = vmatprep.subr.mxu0 0.0
    %883 = vmatpush1.msra.mxu0 0.0
    %884 = vmatprep.subr.mxu0 0.0
    %885 = vmatpush1.msra.mxu0 0.0
    %886 = vmatprep.subr.mxu0 0.0
    %887 = vmatpush1.msra.mxu0 0.0
    %888 = vmatprep.subr.mxu0 0.0
    %889 = vmatpush1.msra.mxu0 0.0
    %890 = vmatprep.subr.mxu0 0.0
    %891 = vmatpush1.msra.mxu0 0.0
    %892 = vmatprep.subr.mxu0 0.0
    %893 = vmatpush1.msra.mxu0 0.0
    %894 = vmatprep.subr.mxu0 0.0
    %895 = vmatpush1.msra.mxu0 0.0
    %896 = vmatprep.subr.mxu0 0.0
    %897 = vmatpush1.msra.mxu0 0.0
    %898 = vmatprep.subr.mxu0 0.0
    %899 = vmatpush1.msra.mxu0 0.0
    %900 = vmatprep.subr.mxu0 0.0
    %901 = vmatpush1.msra.mxu0 %v45
    %902 = vmatprep.subr.mxu0 0.0
    %903 = vmatpush1.msra.mxu0 %v44
    %904 = vmatprep.subr.mxu0 0.0
    %905 = vmatpush1.msra.mxu0 %v43
    %906 = vmatprep.subr.mxu0 0.0
    %907 = vmatpush1.msra.mxu0 %v42
    %908 = vmatprep.subr.mxu0 0.0
    %909 = vmatpush2.msra.mxu0 0.0
    %910 = vmatprep.subr.mxu0 0.0
    %911 = vmatpush2.msra.mxu0 0.0
    %912 = vmatprep.subr.mxu0 0.0
    %913 = vmatpush2.msra.mxu0 0.0
    %914 = vmatprep.subr.mxu0 0.0
    %915 = vmatpush2.msra.mxu0 0.0
    %916 = vmatprep.subr.mxu0 0.0
    %917 = vmatpush2.msra.mxu0 0.0
    %918 = vmatprep.subr.mxu0 0.0
    %919 = vmatpush2.msra.mxu0 0.0
    %920 = vmatprep.subr.mxu0 0.0
    %921 = vmatpush2.msra.mxu0 0.0
    %922 = vmatprep.subr.mxu0 0.0
    %923 = vmatpush2.msra.mxu0 0.0
    %924 = vmatprep.subr.mxu0 0.0
    %925 = vmatpush2.msra.mxu0 0.0
    %926 = vmatprep.subr.mxu0 0.0
    %927 = vmatpush2.msra.mxu0 0.0
    %928 = vmatprep.subr.mxu0 0.0
    %929 = vmatpush2.msra.mxu0 0.0
    %930 = vmatprep.subr.mxu0 0.0
    %931 = vmatpush2.msra.mxu0 0.0
    %932 = vmatprep.subr.mxu0 0.0
    %933 = vmatpush2.msra.mxu0 0.0
    %934 = vmatprep.subr.mxu0 0.0
    %935 = vmatpush2.msra.mxu0 0.0
    %936 = vmatprep.subr.mxu0 0.0
    %937 = vmatpush2.msra.mxu0 0.0
    %938 = vmatprep.subr.mxu0 0.0
    %939 = vmatpush2.msra.mxu0 0.0
    %940 = vmatprep.mubr.f32.mxu0 0.0
    %941 = vmatmul.mubr.f32.gmra.mxu0 %v874
    %v942 = vpop.f32.mrf.mxu0
    %v943 = vadd.f32 0.0, %v942
    %v944 = vpop.f32.mrf.mxu0
    %945 = vdwg.mxu0
    %v947 = vrot.slane %v943, 1
    %v949 = vadd.f32 %v128, %v947
    %v950 = vxor.u32 %v949, 2147483648
    %v951 = vmul.f32 %v950, 1.442695
    %v952 = vpow.pop %v951
    %v953 = vadd.f32 %v952, 1.0
    %v954 = vrcp.pop %v953
    %v955 = vmul.f32 1.0, %v954
    %v956 = vtanh.pop %v949
    %v958 = vrot.slane %v863, 7
    %v960 = vmul.f32 %v955, %v958
    %962 = vrot.lane.b32.xlu0 %v956, 64
    %v963 = vpop.permute.xlu0 %962
    %v965 = vmul.f32 %v955, %v963
    %967 = vrot.lane.b32.xlu0 %v965, 32
    %v968 = vpop.permute.xlu0 %967
    %v970 = vadd.f32 %v960, %v968
    %v971 = vtanh.pop %v970
    %973 = vrot.lane.b32.xlu0 %v971, 64
    %v974 = vpop.permute.xlu0 %973
    %v976 = vmul.f32 %v955, %v974
    %vm977 = vcmask 1040384
    %v978 = vsel %vm977, %v228, %v334
    %vm979 = vcmask 1041408
    %v980 = vsel %vm979, %v978, %v441
    %vm981 = vcmask 1042432
    %v982 = vsel %vm981, %v980, %v548
    %vm983 = vcmask 1043456
    %v984 = vsel %vm983, %v982, %v655
    %vm985 = vcmask 1044480
    %v986 = vsel %vm985, %v984, %v762
    %vm987 = vcmask 1045504
    %v988 = vsel %vm987, %v986, %v869
    %vm989 = vcmask 1046528
    %v990 = vsel %vm989, %v988, %v976
    %v991 = vlaneseq
    %v992 = vshrl.u32 %v991, 7
    %v993 = vsub.s32 0, %v992
    %v994 = vrot.slane %v51, %v993
    %996 = vrot.lane.b32.xlu0 %v990, 32
    %v997 = vpop.permute.xlu0 %996
    %v998 = vsel %vm57, %v997, 0
    %1000 = vmatprep.subr.mxu0 0.0
    %1001 = vmatpush1.msra.mxu0 0.0
    %1002 = vmatprep.subr.mxu0 0.0
    %1003 = vmatpush1.msra.mxu0 0.0
    %1004 = vmatprep.subr.mxu0 0.0
    %1005 = vmatpush1.msra.mxu0 0.0
    %1006 = vmatprep.subr.mxu0 0.0
    %1007 = vmatpush1.msra.mxu0 0.0
    %1008 = vmatprep.subr.mxu0 0.0
    %1009 = vmatpush1.msra.mxu0 0.0
    %1010 = vmatprep.subr.mxu0 0.0
    %1011 = vmatpush1.msra.mxu0 0.0
    %1012 = vmatprep.subr.mxu0 0.0
    %1013 = vmatpush1.msra.mxu0 0.0
    %1014 = vmatprep.subr.mxu0 0.0
    %1015 = vmatpush1.msra.mxu0 0.0
    %1016 = vmatprep.subr.mxu0 0.0
    %1017 = vmatpush1.msra.mxu0 0.0
    %1018 = vmatprep.subr.mxu0 0.0
    %1019 = vmatpush1.msra.mxu0 0.0
    %1020 = vmatprep.subr.mxu0 0.0
    %1021 = vmatpush1.msra.mxu0 0.0
    %1022 = vmatprep.subr.mxu0 0.0
    %1023 = vmatpush1.msra.mxu0 0.0
    %1024 = vmatprep.subr.mxu0 0.0
    %1025 = vmatpush1.msra.mxu0 %v50
    %1026 = vmatprep.subr.mxu0 0.0
    %1027 = vmatpush1.msra.mxu0 %v49
    %1028 = vmatprep.subr.mxu0 0.0
    %1029 = vmatpush1.msra.mxu0 %v48
    %1030 = vmatprep.subr.mxu0 0.0
    %1031 = vmatpush1.msra.mxu0 %v47
    %1032 = vmatprep.subr.mxu0 0.0
    %1033 = vmatpush2.msra.mxu0 0.0
    %1034 = vmatprep.subr.mxu0 0.0
    %1035 = vmatpush2.msra.mxu0 0.0
    %1036 = vmatprep.subr.mxu0 0.0
    %1037 = vmatpush2.msra.mxu0 0.0
    %1038 = vmatprep.subr.mxu0 0.0
    %1039 = vmatpush2.msra.mxu0 0.0
    %1040 = vmatprep.subr.mxu0 0.0
    %1041 = vmatpush2.msra.mxu0 0.0
    %1042 = vmatprep.subr.mxu0 0.0
    %1043 = vmatpush2.msra.mxu0 0.0
    %1044 = vmatprep.subr.mxu0 0.0
    %1045 = vmatpush2.msra.mxu0 0.0
    %1046 = vmatprep.subr.mxu0 0.0
    %1047 = vmatpush2.msra.mxu0 0.0
    %1048 = vmatprep.subr.mxu0 0.0
    %1049 = vmatpush2.msra.mxu0 0.0
    %1050 = vmatprep.subr.mxu0 0.0
    %1051 = vmatpush2.msra.mxu0 0.0
    %1052 = vmatprep.subr.mxu0 0.0
    %1053 = vmatpush2.msra.mxu0 0.0
    %1054 = vmatprep.subr.mxu0 0.0
    %1055 = vmatpush2.msra.mxu0 0.0
    %1056 = vmatprep.subr.mxu0 0.0
    %1057 = vmatpush2.msra.mxu0 0.0
    %1058 = vmatprep.subr.mxu0 0.0
    %1059 = vmatpush2.msra.mxu0 0.0
    %1060 = vmatprep.subr.mxu0 0.0
    %1061 = vmatpush2.msra.mxu0 0.0
    %1062 = vmatprep.subr.mxu0 0.0
    %1063 = vmatpush2.msra.mxu0 0.0
    %1064 = vmatprep.mubr.f32.mxu0 0.0
    %1065 = vmatmul.mubr.f32.gmra.mxu0 %v998
    %v1066 = vpop.f32.mrf.mxu0
    %v1067 = vadd.f32 %v994, %v1066
    %v1068 = vpop.f32.mrf.mxu0
    %1069 = vdwg.mxu0
    %1070 = vmax.xlane.f32.xlu0 %v1067
    %v1071 = vpop.xlane.xlu0 %1070
    %v1072 = vsub.f32 %v1067, %v1071
    %v1073 = vmul.f32 %v1072, 1.442695
    %v1074 = vpow.pop %v1073
    %1075 = vadd.xlane.f32.xlu0 %v1074
    %v1076 = vpop.xlane.xlu0 %1075
    %v1077 = vlog2.pop %v1076
    %v1078 = vmul.f32 %v1077, 0.6931472
    %v1079 = vsub.f32 %v1072, %v1078
    %vm1080 = vcmask 64512
    %1081 = vst.msk [vmem:[#allocation7] sm:$0xff] %vm1080, %v1079
    // Predicated region
    $region18: #{lstm_tagger_forward.1} parent=1 // pred_check
      _
    $region19: #{lstm_tagger_forward.1} parent=1 // pred_check_branch
      %1083 = sbr.rel (0) target = $region21
    $region20: #{lstm_tagger_forward.1} parent=1 // pred_region
      %s1085 = ssub.s32 128, 128
      %1086 = vsyncadd [#allocation4], %s1085
      %s1088 = sshll.u32 [#allocation7], 4
      %s1089 = int_to_ptr.vmem [resolvable:$true] %s1088
      %1091 = dma.vmem_to_hbm [thread:$0]  %s1089, 128, %s2, [#allocation4]
    $region21: #{lstm_tagger_forward.1} parent=1 // pred_fallthru
      _
    // Predicated region
    $region22: #{lstm_tagger_forward.1} parent=1 // pred_check
      _
    $region23: #{lstm_tagger_forward.1} parent=1 // pred_check_branch
      %1093 = sbr.rel (0) target = $region25
    $region24: #{lstm_tagger_forward.1} parent=1 // pred_region
      %1094 = dma.done [#allocation4], 128
    $region25: #{lstm_tagger_forward.1} parent=1 // pred_fallthru
      _
    %1095 = vsyncpa [#allocation3], 1
    %1096 = vsyncpa [#allocation6], 1
    %1097 = vsyncpa [#allocation4], 1

</llo_original>
